<compile_context>
chip_gen: v7x
topology: tpu7x:2x2x1
jax: 0.10.0
libtpu: 0.0.40
codegen_flags: <defaults>
</compile_context>

<pallas_src>
import functools

import jax
import jax.numpy as jnp
from jax import lax
from jax.experimental import pallas as pl
from jax.experimental.pallas import tpu as pltpu


def _round_up(n, m):
    return ((n + m - 1) // m) * m


def _vmem_capacity_bytes():
    """Physical per-core VMEM; conservative 64 MiB (v7x) fallback."""
    try:
        info = pltpu.get_tpu_info()
        cap = getattr(info, "vmem_capacity_bytes", None)
        if cap:
            return int(cap)
    except Exception:
        pass
    return 64 * 1024 * 1024


def _pick_bt(B, C, Lp, P, budget, block_b):
    """Largest divisor of B that (a) keeps >= 2 grid steps when B >= 2 (DMA pipelining
    + v7x megacore sharding) and (b) fits the per-generation VMEM budget."""
    slab = 2 * 2 * C * Lp * 4                           # per-batch in+out blocks, double-buffered
    fixed = (P * Lp + 8 * Lp * Lp) * 4 + (8 << 20)      # projection + softmax temps + headroom
    best = 1
    for d in range(1, min(B, block_b) + 1):
        if B % d:
            continue
        if B >= 2 and B // d < 2:
            continue
        if d * slab + fixed <= budget:
            best = d
    return best


def _self_attention_kernel(x_ref, w_ref, b_ref, gamma_ref, o_ref, *,
                           Cq8, C8, C, off_f, off_g, off_h,
                           Lp, L_valid, Bt, use_bf16, unroll):
    # x_ref / o_ref block: (Bt, C, Lp) ; w_ref: (P, C) ; b_ref: (P, 1) ; gamma in SMEM.
    w = w_ref[...]
    b = b_ref[...]
    gamma = gamma_ref[0]                 # SMEM scalar read

    # (Lp, 1) padded-row validity mask, built ONCE (hoisted out of the batch loop).
    need_mask = Lp != L_valid
    if need_mask:
        row_valid = lax.broadcasted_iota(jnp.int32, (Lp, 1), 0) < L_valid

    def body(bi, carry):
        xb = x_ref[bi]                                              # (C, Lp)

        # Fused q/k/v projection for this batch: one MXU matmul + lane-broadcast bias.
        proj = jnp.dot(w, xb, preferred_element_type=jnp.float32) + b   # (P, Lp)

        # 8-sublane-aligned slices; zero-padded rows contribute 0 to the contraction.
        fb = proj[off_f:off_f + Cq8]                                # (Cq8, Lp)
        gb = proj[off_g:off_g + Cq8]                                # (Cq8, Lp)
        hb = proj[off_h:off_h + C8]                                 # (C8,  Lp)

        # s = f^T g without an explicit transpose: contract axis 0 of both operands.
        # Kept in f32: operand error here is amplified by exp(), and K = Cq8 is tiny.
        s = lax.dot_general(fb, gb, (((0,), (0,)), ((), ())),
                            preferred_element_type=jnp.float32)    # (Lp, Lp)
        if need_mask:
            s = jnp.where(row_valid, s, -jnp.inf)   # padded l rows get zero weight

        # F.softmax(..., dim=1) on (B, L, L) == softmax over axis 0 of this (Lp, Lp).
        s_max = jnp.max(s, axis=0, keepdims=True)
        e = jnp.exp(s - s_max)
        beta = e * pl.reciprocal(jnp.sum(e, axis=0, keepdims=True), approx=True)

        # o = gamma * (h @ beta) + x.  bf16 MXU operands only when C is large enough
        # for the MXU (and not the (Lp, Lp) beta cast) to be the binding unit.
        if use_bf16:
            o_attn = jnp.dot(hb.astype(jnp.bfloat16), beta.astype(jnp.bfloat16),
                             preferred_element_type=jnp.float32)   # (C8, Lp)
        else:
            o_attn = jnp.dot(hb, beta, preferred_element_type=jnp.float32)

        o_ref[bi] = (gamma * o_attn[:C] + xb).astype(o_ref.dtype)
        return carry

    lax.fori_loop(0, Bt, body, 0, unroll=unroll)


def self_attention_pallas(x, wq, bq, wk, bk, wv, bv, gamma, *, block_b=8):
    """SelfAttention forward.

    x: (B, C, H, W) f32 ; wq/wk: (Cq, C) ; wv: (C, C) ; bq/bk: (Cq, 1) ; bv: (C, 1) ;
    gamma: (1,) f32.
    """
    B, C, H, W = x.shape
    L = H * W
    Cq = wq.shape[0]

    # --- fused, sublane-aligned projection weights / bias --------------------
    Cq8 = _round_up(Cq, 8)
    C8 = _round_up(C, 8)

    def pad_rows(a, rows):
        return jnp.pad(a, ((0, rows - a.shape[0]), (0, 0)))

    w_all = jnp.concatenate(
        [pad_rows(wq, Cq8), pad_rows(wk, Cq8), pad_rows(wv, C8)], axis=0)   # (P, C)
    b_all = jnp.concatenate(
        [pad_rows(bq, Cq8), pad_rows(bk, Cq8), pad_rows(bv, C8)], axis=0)   # (P, 1)
    P = 2 * Cq8 + C8
    off_f, off_g, off_h = 0, Cq8, 2 * Cq8

    # --- natural (B, C, Lp) layout: only lane-pad the spatial axis -----------
    Lp = _round_up(L, 128)
    x3 = x.reshape(B, C, L)
    if Lp != L:
        x3 = jnp.pad(x3, ((0, 0), (0, 0), (0, Lp - L)))

    # --- VMEM budget & block selection ----------------------------------------
    budget = int(0.8 * _vmem_capacity_bytes())   # headroom vs physical VMEM (v7x: 64 MiB)
    Bt = _pick_bt(B, C, Lp, P, budget, block_b)
    grid = (B // Bt,)

    est = (2 * 2 * Bt * C * Lp * 4          # double-buffered in/out blocks
           + 2 * (P * C + P) * 4            # double-buffered fused weights + bias
           + (P * Lp + 8 * Lp * Lp) * 4     # projection + score/softmax intermediates
           + (8 << 20))                     # compiler scratch / spill headroom
    vmem_limit = int(min(max(est, 8 << 20), budget))

    # Don't fully unroll large bodies: at Lp >= 256 a single body already exceeds
    # the 64-vreg file, so unrolling just multiplies spill traffic.
    unroll = bool(Bt == 1 or Lp < 256)

    kernel = functools.partial(
        _self_attention_kernel, Cq8=Cq8, C8=C8, C=C,
        off_f=off_f, off_g=off_g, off_h=off_h,
        Lp=Lp, L_valid=L, Bt=Bt, use_bf16=(C >= 64), unroll=unroll)

    out = pl.pallas_call(
        kernel,
        out_shape=jax.ShapeDtypeStruct((B, C, Lp), x.dtype),
        grid=grid,
        in_specs=[
            pl.BlockSpec((Bt, C, Lp), lambda i: (i, 0, 0)),       # x block (Bt batches)
            pl.BlockSpec((P, C), lambda i: (0, 0)),               # fused W
            pl.BlockSpec((P, 1), lambda i: (0, 0)),               # fused bias
            pl.BlockSpec(memory_space=pltpu.MemorySpace.SMEM),    # gamma scalar
        ],
        out_specs=pl.BlockSpec((Bt, C, Lp), lambda i: (i, 0, 0)),
        compiler_params=pltpu.CompilerParams(
            dimension_semantics=("parallel",),
            vmem_limit_bytes=vmem_limit),
    )(x3, w_all, b_all, gamma)

    if Lp != L:
        out = out[:, :, :L]
    return out.reshape(B, C, H, W)


def self_attention_ref(x, wq, bq, wk, bk, wv, bv, gamma):
    """Pure-JAX f32 reference reproducing the PyTorch forward exactly."""
    B, C, H, W = x.shape
    L = H * W
    xv = x.reshape(B, C, L)
    f = jnp.einsum('qc,bcl->bql', wq, xv) + bq[None]      # (B, Cq, L)
    g = jnp.einsum('qc,bcl->bql', wk, xv) + bk[None]      # (B, Cq, L)
    h = jnp.einsum('oc,bcl->bol', wv, xv) + bv[None]      # (B, C,  L)
    s = jnp.einsum('bql,bqm->blm', f, g)                  # bmm(f^T, g): (B, L, L)
    beta = jax.nn.softmax(s, axis=1)                      # softmax over dim=1
    o = gamma[0] * jnp.einsum('bcl,blm->bcm', h, beta) + xv
    return o.reshape(B, C, H, W)


if __name__ == "__main__":
    # Small shapes consistent with the module: n_channels=4, div=2, spatial 16x16.
    B, C, H, W = 2, 4, 16, 16
    div = 2
    Cq = C // div if C > 1 else C

    key = jax.random.PRNGKey(0)
    kx, kq, kk, kv = jax.random.split(key, 4)

    x = jax.random.normal(kx, (B, C, H, W), dtype=jnp.float32)

    # conv1d() init: kaiming_normal_ on weight (fan_in = C * ks = C), bias zeroed.
    std = jnp.sqrt(2.0 / C)
    wq = jax.random.normal(kq, (Cq, C), dtype=jnp.float32) * std
    wk = jax.random.normal(kk, (Cq, C), dtype=jnp.float32) * std
    wv = jax.random.normal(kv, (C, C), dtype=jnp.float32) * std
    bq = jnp.zeros((Cq, 1), dtype=jnp.float32)
    bk = jnp.zeros((Cq, 1), dtype=jnp.float32)
    bv = jnp.zeros((C, 1), dtype=jnp.float32)
    # gamma is nn.Parameter(tensor([0.0])) in __init__; use a nonzero deterministic
    # value so the attention path is actually exercised (shape (1,) matches torch).
    gamma = jnp.array([0.5], dtype=jnp.float32)

    out = self_attention_pallas(x, wq, bq, wk, bk, wv, bv, gamma)
    out = jax.block_until_ready(out)

    ref = self_attention_ref(x, wq, bq, wk, bk, wv, bv, gamma)
    assert out.shape == (B, C, H, W)
    # Tolerance accounts for the EUP approximate reciprocal in the softmax and
    # default-precision MXU matmuls (bf16 operands are only used when C >= 64).
    assert jnp.allclose(out, ref, atol=2e-2, rtol=2e-2), (
        f"max abs err = {jnp.max(jnp.abs(out - ref))}")

    print("KERNEL_OK")
</pallas_src>

<mosaic_0001>
module attributes {stable_mosaic.version = 11 : i64} {
  func.func @_self_attention_kernel(%arg0: i32, %arg1: memref<1x4x256xf32, #tpu.memory_space<vmem>>, %arg2: memref<24x4xf32, #tpu.memory_space<vmem>>, %arg3: memref<24x1xf32, #tpu.memory_space<vmem>>, %arg4: memref<1xf32, #tpu.memory_space<smem>>, %arg5: memref<1x4x256xf32, #tpu.memory_space<vmem>>) attributes {dimension_semantics = [#tpu.dimension_semantics<parallel>], iteration_bounds = array<i64: 2>, scalar_prefetch = 0 : i64, scratch_operands = 0 : i64, tpu.core_type = #tpu.core_type<tc>, window_params = [{transform_indices = @transform_0, window_bounds = array<i64: 1, 4, 256>}, {pipeline_mode = #tpu.pipeline_mode<synchronous>, transform_indices = @transform_1, window_bounds = array<i64: 24, 4>}, {pipeline_mode = #tpu.pipeline_mode<synchronous>, transform_indices = @transform_2, window_bounds = array<i64: 24, 1>}, {transform_indices = @transform_3, window_bounds = array<i64: 1>}, {transform_indices = @transform_4, window_bounds = array<i64: 1, 4, 256>}]} {
    %c0 = arith.constant 0 : index
    %c0_0 = arith.constant 0 : index
    %0 = vector.load %arg2[%c0, %c0_0] : memref<24x4xf32, #tpu.memory_space<vmem>>, vector<24x4xf32>
    %c0_1 = arith.constant 0 : index
    %c0_2 = arith.constant 0 : index
    %1 = vector.load %arg3[%c0_1, %c0_2] : memref<24x1xf32, #tpu.memory_space<vmem>>, vector<24x1xf32>
    %c0_3 = arith.constant 0 : index
    %2 = memref.load %arg4[%c0_3] : memref<1xf32, #tpu.memory_space<smem>>
    %c0_i32 = arith.constant 0 : i32
    %3 = arith.index_cast %c0_i32 : i32 to index
    %c0_4 = arith.constant 0 : index
    %c0_5 = arith.constant 0 : index
    %4 = vector.load %arg1[%3, %c0_4, %c0_5] : memref<1x4x256xf32, #tpu.memory_space<vmem>>, vector<1x4x256xf32>
    %5 = vector.shape_cast %4 : vector<1x4x256xf32> to vector<4x256xf32>
    %cst = arith.constant dense<0.000000e+00> : vector<24x256xf32>
    %6 = tpu.matmul %0, %5, %cst {dimension_numbers = #tpu.dot_dimension_numbers<[1], [0], [0], [1], [0, 0, 1, 1], [], []>} : vector<24x4xf32>, vector<4x256xf32>, vector<24x256xf32> -> vector<24x256xf32>
    %7 = vector.broadcast %1 : vector<24x1xf32> to vector<24x256xf32>
    %8 = arith.addf %6, %7 : vector<24x256xf32>
    %9 = vector.extract_strided_slice %8 {offsets = [0, 0], sizes = [8, 256], strides = [1, 1]} : vector<24x256xf32> to vector<8x256xf32>
    %10 = vector.extract_strided_slice %8 {offsets = [8, 0], sizes = [8, 256], strides = [1, 1]} : vector<24x256xf32> to vector<8x256xf32>
    %11 = vector.extract_strided_slice %8 {offsets = [16, 0], sizes = [8, 256], strides = [1, 1]} : vector<24x256xf32> to vector<8x256xf32>
    %cst_6 = arith.constant dense<0.000000e+00> : vector<256x256xf32>
    %12 = tpu.matmul %9, %10, %cst_6 {dimension_numbers = #tpu.dot_dimension_numbers<[0], [0], [1], [1], [0, 1, 1, 1], [], []>} : vector<8x256xf32>, vector<8x256xf32>, vector<256x256xf32> -> vector<256x256xf32>
    %cst_7 = arith.constant dense<0xFF800000> : vector<256xf32>
    %13 = vector.multi_reduction <maximumf>, %12, %cst_7 [0] : vector<256x256xf32> to vector<256xf32>
    %14 = vector.shape_cast %13 : vector<256xf32> to vector<1x256xf32>
    %15 = vector.broadcast %14 : vector<1x256xf32> to vector<256x256xf32>
    %16 = arith.subf %12, %15 : vector<256x256xf32>
    %17 = math.exp %16 : vector<256x256xf32>
    %cst_8 = arith.constant dense<0.000000e+00> : vector<256xf32>
    %18 = vector.multi_reduction <add>, %17, %cst_8 [0] : vector<256x256xf32> to vector<256xf32>
    %19 = vector.shape_cast %18 : vector<256xf32> to vector<1x256xf32>
    %20 = tpu.reciprocal %19 {approx = true} : vector<1x256xf32> -> vector<1x256xf32>
    %21 = vector.broadcast %20 : vector<1x256xf32> to vector<256x256xf32>
    %22 = arith.mulf %17, %21 : vector<256x256xf32>
    %cst_9 = arith.constant dense<0.000000e+00> : vector<8x256xf32>
    %23 = tpu.matmul %11, %22, %cst_9 {dimension_numbers = #tpu.dot_dimension_numbers<[1], [0], [0], [1], [0, 0, 1, 1], [], []>} : vector<8x256xf32>, vector<256x256xf32>, vector<8x256xf32> -> vector<8x256xf32>
    %24 = vector.extract_strided_slice %23 {offsets = [0, 0], sizes = [4, 256], strides = [1, 1]} : vector<8x256xf32> to vector<4x256xf32>
    %25 = vector.broadcast %2 : f32 to vector<4x256xf32>
    %26 = arith.mulf %25, %24 : vector<4x256xf32>
    %27 = arith.addf %26, %5 : vector<4x256xf32>
    %28 = arith.index_cast %c0_i32 : i32 to index
    %c0_10 = arith.constant 0 : index
    %c0_11 = arith.constant 0 : index
    %29 = vector.load %arg5[%28, %c0_10, %c0_11] : memref<1x4x256xf32, #tpu.memory_space<vmem>>, vector<1x4x256xf32>
    %30 = vector.shape_cast %29 : vector<1x4x256xf32> to vector<4x256xf32>
    %31 = vector.shape_cast %27 : vector<4x256xf32> to vector<1x4x256xf32>
    tpu.vector_store %arg5[%28, %c0_10, %c0_11], %31 {strides = array<i32>} : memref<1x4x256xf32, #tpu.memory_space<vmem>>, vector<1x4x256xf32>,
    %c1_i32 = arith.constant 1 : i32
    return
  }
  func.func @transform_0(%arg0: i32) -> (i32, i32, i32) {
    %c0_i32 = arith.constant 0 : i32
    %c0_i32_0 = arith.constant 0 : i32
    %c0_i32_1 = arith.constant 0 : i32
    return %arg0, %c0_i32, %c0_i32_0 : i32, i32, i32
  }
  func.func @transform_1(%arg0: i32) -> (i32, i32) {
    %c0_i32 = arith.constant 0 : i32
    %c0_i32_0 = arith.constant 0 : i32
    %c0_i32_1 = arith.constant 0 : i32
    return %c0_i32, %c0_i32_0 : i32, i32
  }
  func.func @transform_2(%arg0: i32) -> (i32, i32) {
    %c0_i32 = arith.constant 0 : i32
    %c0_i32_0 = arith.constant 0 : i32
    %c0_i32_1 = arith.constant 0 : i32
    return %c0_i32, %c0_i32_0 : i32, i32
  }
  func.func @transform_3(%arg0: i32) -> i32 {
    %c0_i32 = arith.constant 0 : i32
    %c0_i32_0 = arith.constant 0 : i32
    return %c0_i32 : i32
  }
  func.func @transform_4(%arg0: i32) -> (i32, i32, i32) {
    %c0_i32 = arith.constant 0 : i32
    %c0_i32_0 = arith.constant 0 : i32
    %c0_i32_1 = arith.constant 0 : i32
    return %arg0, %c0_i32, %c0_i32_0 : i32, i32, i32
  }
}

</mosaic_0001>

<llo_original>
// kernel: tpu_custom_call.1
$region0: #{tpu_custom_call.1}
  #allocation0 [shape = 'u32[]', space=smem, size = 0x4, offset = 0x4, fixed_abs, tag = 'smem constant byte address 0x4 - core index']
  #allocation1 [shape = 'u32[144,128]{1,0:T(1,128)}', space=vmem, size = 0x12000, scoped, tag = 'internal scratch']
  #allocation2 [shape = 'f32[1]{0:T(128)S(6)}', space=smem, size = 0x200, scoped, tag = 'scoped memory for tpu_custom_call.1']
  %s0 = inlined_call_operand.vmem [shape: f32[2,4,256], index: 0, kind: input, shape index: {}]
  %s1 = inlined_call_operand.vmem [shape: f32[24,4], index: 1, kind: input, shape index: {}]
  %s2 = inlined_call_operand.vmem [shape: f32[24,1], index: 2, kind: input, shape index: {}]
  %s3 = inlined_call_operand.<no memory space> [shape: f32[1], index: 3, kind: input, shape index: {}]
  %s4 = inlined_call_operand.hbm [shape: f32[2,4,256], index: 4, kind: output, shape index: {}]
  %s5 = sld [smem:[#allocation0]]
  $region49: #{tpu_custom_call.1} parent=0
    _
  %s7 = ssub.s32 1, %s5
  %s8 = scalar_select 0, %s7, %s5
  %9 = sst [smem:[#allocation2]] %s3
  $region1: #{tpu_custom_call.1} parent=0
    #allocation3 [shape = 'u8[8192]{0}', space=vmem, size = 0x2000, scoped, tag = 'output window, operand 0']
    #allocation4 [shape = 's32[2]{0}', space=sflag, size = 0x8, scoped, tag = 'scoped memory for tpu_custom_call.1']
    %10 = vsyncpa [#allocation4], 0
    %s11 = scalar_lea.sflag [#allocation4], 1
    %12 = vsyncpa %s11, 0
    loop: start=0, step=1, limit=4
    $region2: #{tpu_custom_call.1} parent=1 // loop_pre_header
      _
    $region3: #{tpu_custom_call.1} parent=1 // loop_header
      %s14 = sphi 0, %s18
      %p15 = scmp.ge.s32.totalorder %s14, 4
      %s24 = sphi 0, %s26
      %s27 = sphi 0, %s24
      %s28 = sphi 0, %s27
      %s44 = sphi 0, %s28
      %s48 = sphi 0, %s48
      %s50 = sphi 0, %s48
      %s51 = sphi 0, %s50
      %s65 = sphi 0, %s51
      %s69 = sphi 0, %s69
      %s71 = sphi 0, %s69
      %s72 = sphi 0, %s71
      %s86 = sphi 0, %s72
      %s90 = sphi 0, %s90
      %s92 = sphi 0, %s90
      %s93 = sphi 0, %s92
      %s107 = sphi 0, %s93
      %s113 = sphi 0, %s115
      %s116 = sphi 0, %s113
      %s117 = sphi 0, %s116
      %s133 = sphi 0, %s117
    $region4: #{tpu_custom_call.1} parent=1 // loop_header_branch
      %17 = sbr.rel (%p15) target = $region8
    $region5: #{tpu_custom_call.1} parent=1 // loop_body
      %s19 = ssub.s32 %s14, 1
      %s20 = ssub.s32 %s14, 2
      %s21 = sadd.s32 %s14, 1
      %s22 = ssub.s32 %s14, %s21
      %p23 = scmp.eq.s32.totalorder %s22, 0
      %s25 = sadd.s32 %s24, 1
      %s26 = scalar_select %p23, %s24, %s25
      %p29 = pneg %p23
      %p30 = scmp.eq.s32.totalorder %s14, 1
      %p31 = por %p29, %p30
      %p32 = scmp.ne.s32.totalorder %s24, %s27
      %p33 = scmp.eq.s32.totalorder %s14, 0
      %p34 = por %p32, %p33
      %p35 = scmp.ne.s32.totalorder %s24, %s27
      %p36 = scmp.eq.s32.totalorder %s19, 1
      %p37 = por %p35, %p36
      %p38 = scmp.ne.s32.totalorder %s27, %s28
      %p39 = scmp.eq.s32.totalorder %s19, 0
      %p40 = por %p38, %p39
      %p41 = scmp.ne.s32.totalorder %s27, %s28
      %p42 = scmp.eq.s32.totalorder %s20, 1
      %p43 = por %p41, %p42
      %p45 = scmp.ne.s32.totalorder %s28, %s44
      %p46 = scmp.eq.s32.totalorder %s20, 0
      %p47 = por %p45, %p46
      %s49 = sadd.s32 %s48, 1
      %p52 = scmp.eq.s32.totalorder %s14, 1
      %p53 = scmp.ne.s32.totalorder %s48, %s50
      %p54 = scmp.eq.s32.totalorder %s14, 0
      %p55 = por %p53, %p54
      %p56 = scmp.ne.s32.totalorder %s48, %s50
      %p57 = scmp.eq.s32.totalorder %s19, 1
      %p58 = por %p56, %p57
      %p59 = scmp.ne.s32.totalorder %s50, %s51
      %p60 = scmp.eq.s32.totalorder %s19, 0
      %p61 = por %p59, %p60
      %p62 = scmp.ne.s32.totalorder %s50, %s51
      %p63 = scmp.eq.s32.totalorder %s20, 1
      %p64 = por %p62, %p63
      %p66 = scmp.ne.s32.totalorder %s51, %s65
      %p67 = scmp.eq.s32.totalorder %s20, 0
      %p68 = por %p66, %p67
      %s70 = sadd.s32 %s69, 1
      %p73 = scmp.eq.s32.totalorder %s14, 1
      %p74 = scmp.ne.s32.totalorder %s69, %s71
      %p75 = scmp.eq.s32.totalorder %s14, 0
      %p76 = por %p74, %p75
      %p77 = scmp.ne.s32.totalorder %s69, %s71
      %p78 = scmp.eq.s32.totalorder %s19, 1
      %p79 = por %p77, %p78
      %p80 = scmp.ne.s32.totalorder %s71, %s72
      %p81 = scmp.eq.s32.totalorder %s19, 0
      %p82 = por %p80, %p81
      %p83 = scmp.ne.s32.totalorder %s71, %s72
      %p84 = scmp.eq.s32.totalorder %s20, 1
      %p85 = por %p83, %p84
      %p87 = scmp.ne.s32.totalorder %s72, %s86
      %p88 = scmp.eq.s32.totalorder %s20, 0
      %p89 = por %p87, %p88
      %s91 = sadd.s32 %s90, 1
      %p94 = scmp.eq.s32.totalorder %s14, 1
      %p95 = scmp.ne.s32.totalorder %s90, %s92
      %p96 = scmp.eq.s32.totalorder %s14, 0
      %p97 = por %p95, %p96
      %p98 = scmp.ne.s32.totalorder %s90, %s92
      %p99 = scmp.eq.s32.totalorder %s19, 1
      %p100 = por %p98, %p99
      %p101 = scmp.ne.s32.totalorder %s92, %s93
      %p102 = scmp.eq.s32.totalorder %s19, 0
      %p103 = por %p101, %p102
      %p104 = scmp.ne.s32.totalorder %s92, %s93
      %p105 = scmp.eq.s32.totalorder %s20, 1
      %p106 = por %p104, %p105
      %p108 = scmp.ne.s32.totalorder %s93, %s107
      %p109 = scmp.eq.s32.totalorder %s20, 0
      %p110 = por %p108, %p109
      %s111 = ssub.s32 %s14, %s21
      %p112 = scmp.eq.s32.totalorder %s111, 0
      %s114 = sadd.s32 %s113, 1
      %s115 = scalar_select %p112, %s113, %s114
      %p118 = pneg %p112
      %p119 = scmp.eq.s32.totalorder %s14, 1
      %p120 = por %p118, %p119
      %p121 = scmp.ne.s32.totalorder %s113, %s116
      %p122 = scmp.eq.s32.totalorder %s14, 0
      %p123 = por %p121, %p122
      %p124 = scmp.ne.s32.totalorder %s113, %s116
      %p125 = scmp.eq.s32.totalorder %s19, 1
      %p126 = por %p124, %p125
      %p127 = scmp.ne.s32.totalorder %s116, %s117
      %p128 = scmp.eq.s32.totalorder %s19, 0
      %p129 = por %p127, %p128
      %p130 = scmp.ne.s32.totalorder %s116, %s117
      %p131 = scmp.eq.s32.totalorder %s20, 1
      %p132 = por %p130, %p131
      %p134 = scmp.ne.s32.totalorder %s117, %s133
      %p135 = scmp.eq.s32.totalorder %s20, 0
      %p136 = por %p134, %p135
      %p137 = scmp.le.s32.totalorder 1, %s14
      %p138 = scmp.lt.s32.totalorder %s14, 3
      %p139 = pnand %p137, %p138
      %p140 = pneg %p139
      // Predicated region
      $region9: #{tpu_custom_call.1} parent=5 // pred_check
        _
      $region10: #{tpu_custom_call.1} parent=5 // pred_check_branch
        %142 = sbr.rel (%p139) target = $region12
      $region11: #{tpu_custom_call.1} parent=5 // pred_region
        %s143 = ssub.s32 %s14, 1
        // Predicated region
        $region13: #{tpu_custom_call.1} parent=11 // pred_check
          %p144 = pneg %p61
        $region14: #{tpu_custom_call.1} parent=11 // pred_check_branch
          %146 = sbr.rel (%p144) target = $region16
        $region15: #{tpu_custom_call.1} parent=11 // pred_region
          _
        $region16: #{tpu_custom_call.1} parent=11 // pred_fallthru
          _
        // Predicated region
        $region17: #{tpu_custom_call.1} parent=11 // pred_check
          %p147 = pneg %p82
        $region18: #{tpu_custom_call.1} parent=11 // pred_check_branch
          %149 = sbr.rel (%p147) target = $region20
        $region19: #{tpu_custom_call.1} parent=11 // pred_region
          _
        $region20: #{tpu_custom_call.1} parent=11 // pred_fallthru
          _
        // Predicated region
        $region21: #{tpu_custom_call.1} parent=11 // pred_check
          %p150 = pneg %p103
        $region22: #{tpu_custom_call.1} parent=11 // pred_check_branch
          %152 = sbr.rel (%p150) target = $region24
        $region23: #{tpu_custom_call.1} parent=11 // pred_region
          _
        $region24: #{tpu_custom_call.1} parent=11 // pred_fallthru
          _
      $region12: #{tpu_custom_call.1} parent=5 // pred_fallthru
        _
      %p153 = scmp.lt.s32.totalorder %s14, 2
      // Predicated region
      $region25: #{tpu_custom_call.1} parent=5 // pred_check
        %p154 = pneg %p153
      $region26: #{tpu_custom_call.1} parent=5 // pred_check_branch
        %156 = sbr.rel (%p154) target = $region28
      $region27: #{tpu_custom_call.1} parent=5 // pred_region
        // Predicated region
        $region29: #{tpu_custom_call.1} parent=27 // pred_check
          %p157 = pneg %p34
        $region30: #{tpu_custom_call.1} parent=27 // pred_check_branch
          %159 = sbr.rel (%p157) target = $region32
        $region31: #{tpu_custom_call.1} parent=27 // pred_region
          %p160 = scmp.lt.s32.totalorder %s14, 1
          %s161 = scalar_select %p160, %s14, 1
          %s162 = smul.addr %s161, 2
          %s163 = smul.addr %s162, 4
          %s164 = scalar_lea.vmem %s0, %s163
        $region32: #{tpu_custom_call.1} parent=27 // pred_fallthru
          _
      $region28: #{tpu_custom_call.1} parent=5 // pred_fallthru
        _
      %p165 = scmp.le.s32.totalorder 1, %s14
      %p166 = scmp.lt.s32.totalorder %s14, 3
      %p167 = pnand %p165, %p166
      %p168 = pneg %p167
      // Predicated region
      $region33: #{tpu_custom_call.1} parent=5 // pred_check
        _
      $region34: #{tpu_custom_call.1} parent=5 // pred_check_branch
        %170 = sbr.rel (%p167) target = $region36
      $region35: #{tpu_custom_call.1} parent=5 // pred_region
        %s171 = ssub.s32 %s14, 1
        %p172 = scmp.lt.s32.totalorder %s19, 1
        %s173 = scalar_select %p172, %s19, 1
        %s174 = smul.addr %s173, 2
        %s175 = smul.addr %s174, 4
        %s176 = scalar_lea.vmem %s0, %s175
        %p177 = pneg %p40
        %p178 = pneg %p37
        %p179 = pneg %p61
        %p180 = pneg %p58
        %p181 = pneg %p82
        %p182 = pneg %p79
        %p183 = pneg %p103
        %p184 = pneg %p100
        %p185 = pneg %p129
        %p186 = pneg %p126
        %s187 = sand.u32 %s116, 1
        %s188 = scalar_lea.sflag [#allocation4], %s187
        %s189 = sand.u32 %s116, 1
        %s190 = smul.addr %s189, 8
        %s191 = scalar_lea.vmem [#allocation3], %s190
        %p192 = scmp.lt.s32.totalorder %s19, 1
        %s193 = scalar_select %p192, %s19, 1
        %s194 = smul.addr %s193, 2
        %s195 = smul.addr %s194, 4
        %s196 = scalar_lea.vmem %s0, %s195
        %v197 = vld [vmem:[%s1] sm:$0xff]
        %v198 = vld [vmem:[%s1 + $0x8] sm:$0xff]
        %v199 = vld [vmem:[%s1 + $0x10] sm:$0xff]
        %v200 = vld [vmem:[%s2] sm:$0xff]
        %v201 = vld [vmem:[%s2 + $0x8] sm:$0xff]
        %v202 = vld [vmem:[%s2 + $0x10] sm:$0xff]
        %s203 = sld [smem:[#allocation2]]
        %v204 = vld [vmem:[%s196] sm:$0xff]
        %206 = vset.pattern.permute.xlu0 0
        %207 = vperm.xlu0 %206, %v200
        %v208 = vpop.permute.xlu0 %207
        %211 = vset.pattern.permute.xlu0 0
        %212 = vperm.xlu0 %211, %v201
        %v213 = vpop.permute.xlu0 %212
        %216 = vset.pattern.permute.xlu0 0
        %217 = vperm.xlu0 %216, %v202
        %v218 = vpop.permute.xlu0 %217
        %v221 = vcombine.high %v204, %v204
        %vm222 = vcmask 31744
        %v224 = vsel %vm222, %v197, 0
        %v227 = vsel %vm222, %v198, 0
        %v230 = vsel %vm222, %v199, 0
        %vm232 = vcmask 1043456
        %v233 = vsel %vm232, %v204, 0
        %v235 = vsel %vm232, %v221, 0
        %237 = vmatprep.subr.mxu0 %v235
        %238 = vmatpush1.msra.mxu0 %v233
        %239 = vmatprep.subr.mxu0 0.0
        %240 = vmatpush1.msra.mxu0 0.0
        %241 = vmatprep.subr.mxu0 0.0
        %242 = vmatpush1.msra.mxu0 0.0
        %243 = vmatprep.subr.mxu0 0.0
        %244 = vmatpush1.msra.mxu0 0.0
        %245 = vmatprep.subr.mxu0 0.0
        %246 = vmatpush1.msra.mxu0 0.0
        %247 = vmatprep.subr.mxu0 0.0
        %248 = vmatpush1.msra.mxu0 0.0
        %249 = vmatprep.subr.mxu0 0.0
        %250 = vmatpush1.msra.mxu0 0.0
        %251 = vmatprep.subr.mxu0 0.0
        %252 = vmatpush1.msra.mxu0 0.0
        %253 = vmatprep.subr.mxu0 0.0
        %254 = vmatpush1.msra.mxu0 0.0
        %255 = vmatprep.subr.mxu0 0.0
        %256 = vmatpush1.msra.mxu0 0.0
        %257 = vmatprep.subr.mxu0 0.0
        %258 = vmatpush1.msra.mxu0 0.0
        %259 = vmatprep.subr.mxu0 0.0
        %260 = vmatpush1.msra.mxu0 0.0
        %261 = vmatprep.subr.mxu0 0.0
        %262 = vmatpush1.msra.mxu0 0.0
        %263 = vmatprep.subr.mxu0 0.0
        %264 = vmatpush1.msra.mxu0 0.0
        %265 = vmatprep.subr.mxu0 0.0
        %266 = vmatpush1.msra.mxu0 0.0
        %267 = vmatprep.subr.mxu0 0.0
        %268 = vmatpush1.msra.mxu0 0.0
        %269 = vmatprep.subr.mxu0 0.0
        %270 = vmatpush1.msra.mxu0 0.0
        %271 = vmatprep.subr.mxu0 0.0
        %272 = vmatpush1.msra.mxu0 0.0
        %273 = vmatprep.subr.mxu0 0.0
        %274 = vmatpush1.msra.mxu0 0.0
        %275 = vmatprep.subr.mxu0 0.0
        %276 = vmatpush1.msra.mxu0 0.0
        %277 = vmatprep.subr.mxu0 0.0
        %278 = vmatpush1.msra.mxu0 0.0
        %279 = vmatprep.subr.mxu0 0.0
        %280 = vmatpush1.msra.mxu0 0.0
        %281 = vmatprep.subr.mxu0 0.0
        %282 = vmatpush1.msra.mxu0 0.0
        %283 = vmatprep.subr.mxu0 0.0
        %284 = vmatpush1.msra.mxu0 0.0
        %285 = vmatprep.subr.mxu0 0.0
        %286 = vmatpush1.msra.mxu0 0.0
        %287 = vmatprep.subr.mxu0 0.0
        %288 = vmatpush1.msra.mxu0 0.0
        %289 = vmatprep.subr.mxu0 0.0
        %290 = vmatpush1.msra.mxu0 0.0
        %291 = vmatprep.subr.mxu0 0.0
        %292 = vmatpush1.msra.mxu0 0.0
        %293 = vmatprep.subr.mxu0 0.0
        %294 = vmatpush1.msra.mxu0 0.0
        %295 = vmatprep.subr.mxu0 0.0
        %296 = vmatpush1.msra.mxu0 0.0
        %297 = vmatprep.subr.mxu0 0.0
        %298 = vmatpush1.msra.mxu0 0.0
        %299 = vmatprep.subr.mxu0 0.0
        %300 = vmatpush1.msra.mxu0 0.0
        %301 = vmatprep.mubr.f32.mxu0 0.0
        %302 = vmatmul.mubr.f32.gmra.mrb[0].mxu0 %v224
        %v303 = vpop.f32.mrb[0].mxu0
        %v304 = vadd.f32 %v208, %v303
        %v305 = vpop.f32.mrb[0].mxu0
        %v306 = vadd.f32 %v208, %v305
        %307 = vmatprep.mubr.f32.mxu0 0.0
        %308 = vmatmul.mubr.f32.gmra.mrb[0].mxu0 %v227
        %v309 = vpop.f32.mrb[0].mxu0
        %v310 = vadd.f32 %v213, %v309
        %v311 = vpop.f32.mrb[0].mxu0
        %v312 = vadd.f32 %v213, %v311
        %313 = vmatprep.mubr.f32.mxu0 0.0
        %314 = vmatmul.mubr.f32.gmra.mrb[0].mxu0 %v230
        %v315 = vpop.f32.mrb[0].mxu0
        %v316 = vadd.f32 %v218, %v315
        %v317 = vpop.f32.mrb[0].mxu0
        %v318 = vadd.f32 %v218, %v317
        %319 = vdwg.mxu0
        %320 = vxpose.xlu0.b32.start [1/16] %v304, 128
        %321 = vxpose.xlu0.b32.cont [2/16] 0.0, 128
        %322 = vxpose.xlu0.b32.cont [3/16] 0.0, 128
        %323 = vxpose.xlu0.b32.cont [4/16] 0.0, 128
        %324 = vxpose.xlu0.b32.cont [5/16] 0.0, 128
        %325 = vxpose.xlu0.b32.cont [6/16] 0.0, 128
        %326 = vxpose.xlu0.b32.cont [7/16] 0.0, 128
        %327 = vxpose.xlu0.b32.cont [8/16] 0.0, 128
        %328 = vxpose.xlu0.b32.cont [9/16] 0.0, 128
        %329 = vxpose.xlu0.b32.cont [10/16] 0.0, 128
        %330 = vxpose.xlu0.b32.cont [11/16] 0.0, 128
        %331 = vxpose.xlu0.b32.cont [12/16] 0.0, 128
        %332 = vxpose.xlu0.b32.cont [13/16] 0.0, 128
        %333 = vxpose.xlu0.b32.cont [14/16] 0.0, 128
        %334 = vxpose.xlu0.b32.cont [15/16] 0.0, 128
        %335 = vxpose.xlu0.b32.end [16/16] 0.0, 128
        %v336 = vpop.trf.xlu0
        %v337 = vpop.trf.xlu0
        %v338 = vpop.trf.xlu0
        %v339 = vpop.trf.xlu0
        %v340 = vpop.trf.xlu0
        %v341 = vpop.trf.xlu0
        %v342 = vpop.trf.xlu0
        %v343 = vpop.trf.xlu0
        %v344 = vpop.trf.xlu0
        %v345 = vpop.trf.xlu0
        %v346 = vpop.trf.xlu0
        %v347 = vpop.trf.xlu0
        %v348 = vpop.trf.xlu0
        %v349 = vpop.trf.xlu0
        %v350 = vpop.trf.xlu0
        %v351 = vpop.trf.xlu0
        %352 = vxpose.xlu0.b32.start [1/16] %v306, 128
        %353 = vxpose.xlu0.b32.cont [2/16] 0.0, 128
        %354 = vxpose.xlu0.b32.cont [3/16] 0.0, 128
        %355 = vxpose.xlu0.b32.cont [4/16] 0.0, 128
        %356 = vxpose.xlu0.b32.cont [5/16] 0.0, 128
        %357 = vxpose.xlu0.b32.cont [6/16] 0.0, 128
        %358 = vxpose.xlu0.b32.cont [7/16] 0.0, 128
        %359 = vxpose.xlu0.b32.cont [8/16] 0.0, 128
        %360 = vxpose.xlu0.b32.cont [9/16] 0.0, 128
        %361 = vxpose.xlu0.b32.cont [10/16] 0.0, 128
        %362 = vxpose.xlu0.b32.cont [11/16] 0.0, 128
        %363 = vxpose.xlu0.b32.cont [12/16] 0.0, 128
        %364 = vxpose.xlu0.b32.cont [13/16] 0.0, 128
        %365 = vxpose.xlu0.b32.cont [14/16] 0.0, 128
        %366 = vxpose.xlu0.b32.cont [15/16] 0.0, 128
        %367 = vxpose.xlu0.b32.end [16/16] 0.0, 128
        %v368 = vpop.trf.xlu0
        %v369 = vpop.trf.xlu0
        %v370 = vpop.trf.xlu0
        %v371 = vpop.trf.xlu0
        %v372 = vpop.trf.xlu0
        %v373 = vpop.trf.xlu0
        %v374 = vpop.trf.xlu0
        %v375 = vpop.trf.xlu0
        %v376 = vpop.trf.xlu0
        %v377 = vpop.trf.xlu0
        %v378 = vpop.trf.xlu0
        %v379 = vpop.trf.xlu0
        %v380 = vpop.trf.xlu0
        %v381 = vpop.trf.xlu0
        %v382 = vpop.trf.xlu0
        %v383 = vpop.trf.xlu0
        %vm384 = vcmask 64512
        %v386 = vsel %vm384, %v336, 0
        %v389 = vsel %vm384, %v337, 0
        %v392 = vsel %vm384, %v338, 0
        %v395 = vsel %vm384, %v339, 0
        %v398 = vsel %vm384, %v340, 0
        %v401 = vsel %vm384, %v341, 0
        %v404 = vsel %vm384, %v342, 0
        %v407 = vsel %vm384, %v343, 0
        %v410 = vsel %vm384, %v344, 0
        %v413 = vsel %vm384, %v345, 0
        %v416 = vsel %vm384, %v346, 0
        %v419 = vsel %vm384, %v347, 0
        %v422 = vsel %vm384, %v348, 0
        %v425 = vsel %vm384, %v349, 0
        %v428 = vsel %vm384, %v350, 0
        %v431 = vsel %vm384, %v351, 0
        %v434 = vsel %vm384, %v368, 0
        %v437 = vsel %vm384, %v369, 0
        %v440 = vsel %vm384, %v370, 0
        %v443 = vsel %vm384, %v371, 0
        %v446 = vsel %vm384, %v372, 0
        %v449 = vsel %vm384, %v373, 0
        %v452 = vsel %vm384, %v374, 0
        %v455 = vsel %vm384, %v375, 0
        %v458 = vsel %vm384, %v376, 0
        %v461 = vsel %vm384, %v377, 0
        %v464 = vsel %vm384, %v378, 0
        %v467 = vsel %vm384, %v379, 0
        %v470 = vsel %vm384, %v380, 0
        %v473 = vsel %vm384, %v381, 0
        %v476 = vsel %vm384, %v382, 0
        %v479 = vsel %vm384, %v383, 0
        %481 = vmatprep.subr.mxu0 %v312
        %482 = vmatpush1.msra.mxu0 %v310
        %483 = vmatprep.subr.mxu0 0.0
        %484 = vmatpush1.msra.mxu0 0.0
        %485 = vmatprep.subr.mxu0 0.0
        %486 = vmatpush1.msra.mxu0 0.0
        %487 = vmatprep.subr.mxu0 0.0
        %488 = vmatpush1.msra.mxu0 0.0
        %489 = vmatprep.subr.mxu0 0.0
        %490 = vmatpush1.msra.mxu0 0.0
        %491 = vmatprep.subr.mxu0 0.0
        %492 = vmatpush1.msra.mxu0 0.0
        %493 = vmatprep.subr.mxu0 0.0
        %494 = vmatpush1.msra.mxu0 0.0
        %495 = vmatprep.subr.mxu0 0.0
        %496 = vmatpush1.msra.mxu0 0.0
        %497 = vmatprep.subr.mxu0 0.0
        %498 = vmatpush1.msra.mxu0 0.0
        %499 = vmatprep.subr.mxu0 0.0
        %500 = vmatpush1.msra.mxu0 0.0
        %501 = vmatprep.subr.mxu0 0.0
        %502 = vmatpush1.msra.mxu0 0.0
        %503 = vmatprep.subr.mxu0 0.0
        %504 = vmatpush1.msra.mxu0 0.0
        %505 = vmatprep.subr.mxu0 0.0
        %506 = vmatpush1.msra.mxu0 0.0
        %507 = vmatprep.subr.mxu0 0.0
        %508 = vmatpush1.msra.mxu0 0.0
        %509 = vmatprep.subr.mxu0 0.0
        %510 = vmatpush1.msra.mxu0 0.0
        %511 = vmatprep.subr.mxu0 0.0
        %512 = vmatpush1.msra.mxu0 0.0
        %513 = vmatprep.subr.mxu0 0.0
        %514 = vmatpush1.msra.mxu0 0.0
        %515 = vmatprep.subr.mxu0 0.0
        %516 = vmatpush1.msra.mxu0 0.0
        %517 = vmatprep.subr.mxu0 0.0
        %518 = vmatpush1.msra.mxu0 0.0
        %519 = vmatprep.subr.mxu0 0.0
        %520 = vmatpush1.msra.mxu0 0.0
        %521 = vmatprep.subr.mxu0 0.0
        %522 = vmatpush1.msra.mxu0 0.0
        %523 = vmatprep.subr.mxu0 0.0
        %524 = vmatpush1.msra.mxu0 0.0
        %525 = vmatprep.subr.mxu0 0.0
        %526 = vmatpush1.msra.mxu0 0.0
        %527 = vmatprep.subr.mxu0 0.0
        %528 = vmatpush1.msra.mxu0 0.0
        %529 = vmatprep.subr.mxu0 0.0
        %530 = vmatpush1.msra.mxu0 0.0
        %531 = vmatprep.subr.mxu0 0.0
        %532 = vmatpush1.msra.mxu0 0.0
        %533 = vmatprep.subr.mxu0 0.0
        %534 = vmatpush1.msra.mxu0 0.0
        %535 = vmatprep.subr.mxu0 0.0
        %536 = vmatpush1.msra.mxu0 0.0
        %537 = vmatprep.subr.mxu0 0.0
        %538 = vmatpush1.msra.mxu0 0.0
        %539 = vmatprep.subr.mxu0 0.0
        %540 = vmatpush1.msra.mxu0 0.0
        %541 = vmatprep.subr.mxu0 0.0
        %542 = vmatpush1.msra.mxu0 0.0
        %543 = vmatprep.subr.mxu0 0.0
        %544 = vmatpush1.msra.mxu0 0.0
        %545 = vmatprep.mubr.f32.mxu0 0.0
        %546 = vmatmul.mubr.f32.gmra.mrb[0].mxu0 %v386
        %v547 = vpop.f32.mrb[0].mxu0
        %v548 = vadd.f32 0.0, %v547
        %v549 = vpop.f32.mrb[0].mxu0
        %v550 = vadd.f32 0.0, %v549
        %551 = vmatprep.mubr.f32.mxu0 0.0
        %552 = vmatmul.mubr.f32.gmra.mrb[0].mxu0 %v389
        %v553 = vpop.f32.mrb[0].mxu0
        %v554 = vadd.f32 0.0, %v553
        %v555 = vpop.f32.mrb[0].mxu0
        %v556 = vadd.f32 0.0, %v555
        %557 = vmatprep.mubr.f32.mxu0 0.0
        %558 = vmatmul.mubr.f32.gmra.mrb[0].mxu0 %v392
        %v559 = vpop.f32.mrb[0].mxu0
        %v560 = vadd.f32 0.0, %v559
        %v561 = vpop.f32.mrb[0].mxu0
        %v562 = vadd.f32 0.0, %v561
        %563 = vmatprep.mubr.f32.mxu0 0.0
        %564 = vmatmul.mubr.f32.gmra.mrb[0].mxu0 %v395
        %v565 = vpop.f32.mrb[0].mxu0
        %v566 = vadd.f32 0.0, %v565
        %v567 = vpop.f32.mrb[0].mxu0
        %v568 = vadd.f32 0.0, %v567
        %569 = vmatprep.mubr.f32.mxu0 0.0
        %570 = vmatmul.mubr.f32.gmra.mrb[0].mxu0 %v398
        %v571 = vpop.f32.mrb[0].mxu0
        %v572 = vadd.f32 0.0, %v571
        %v573 = vpop.f32.mrb[0].mxu0
        %v574 = vadd.f32 0.0, %v573
        %575 = vmatprep.mubr.f32.mxu0 0.0
        %576 = vmatmul.mubr.f32.gmra.mrb[0].mxu0 %v401
        %v577 = vpop.f32.mrb[0].mxu0
        %v578 = vadd.f32 0.0, %v577
        %v579 = vpop.f32.mrb[0].mxu0
        %v580 = vadd.f32 0.0, %v579
        %581 = vmatprep.mubr.f32.mxu0 0.0
        %582 = vmatmul.mubr.f32.gmra.mrb[0].mxu0 %v404
        %v583 = vpop.f32.mrb[0].mxu0
        %v584 = vadd.f32 0.0, %v583
        %v585 = vpop.f32.mrb[0].mxu0
        %v586 = vadd.f32 0.0, %v585
        %587 = vmatprep.mubr.f32.mxu0 0.0
        %588 = vmatmul.mubr.f32.gmra.mrb[0].mxu0 %v407
        %v589 = vpop.f32.mrb[0].mxu0
        %v590 = vadd.f32 0.0, %v589
        %v591 = vpop.f32.mrb[0].mxu0
        %v592 = vadd.f32 0.0, %v591
        %593 = vmatprep.mubr.f32.mxu0 0.0
        %594 = vmatmul.mubr.f32.gmra.mrb[0].mxu0 %v410
        %v595 = vpop.f32.mrb[0].mxu0
        %v596 = vadd.f32 0.0, %v595
        %v597 = vpop.f32.mrb[0].mxu0
        %v598 = vadd.f32 0.0, %v597
        %599 = vmatprep.mubr.f32.mxu0 0.0
        %600 = vmatmul.mubr.f32.gmra.mrb[0].mxu0 %v413
        %v601 = vpop.f32.mrb[0].mxu0
        %v602 = vadd.f32 0.0, %v601
        %v603 = vpop.f32.mrb[0].mxu0
        %v604 = vadd.f32 0.0, %v603
        %605 = vmatprep.mubr.f32.mxu0 0.0
        %606 = vmatmul.mubr.f32.gmra.mrb[0].mxu0 %v416
        %v607 = vpop.f32.mrb[0].mxu0
        %v608 = vadd.f32 0.0, %v607
        %v609 = vpop.f32.mrb[0].mxu0
        %v610 = vadd.f32 0.0, %v609
        %611 = vmatprep.mubr.f32.mxu0 0.0
        %612 = vmatmul.mubr.f32.gmra.mrb[0].mxu0 %v419
        %v613 = vpop.f32.mrb[0].mxu0
        %v614 = vadd.f32 0.0, %v613
        %v615 = vpop.f32.mrb[0].mxu0
        %v616 = vadd.f32 0.0, %v615
        %617 = vmatprep.mubr.f32.mxu0 0.0
        %618 = vmatmul.mubr.f32.gmra.mrb[0].mxu0 %v422
        %v619 = vpop.f32.mrb[0].mxu0
        %v620 = vadd.f32 0.0, %v619
        %v621 = vpop.f32.mrb[0].mxu0
        %v622 = vadd.f32 0.0, %v621
        %623 = vmatprep.mubr.f32.mxu0 0.0
        %624 = vmatmul.mubr.f32.gmra.mrb[0].mxu0 %v425
        %v625 = vpop.f32.mrb[0].mxu0
        %v626 = vadd.f32 0.0, %v625
        %v627 = vpop.f32.mrb[0].mxu0
        %v628 = vadd.f32 0.0, %v627
        %629 = vmatprep.mubr.f32.mxu0 0.0
        %630 = vmatmul.mubr.f32.gmra.mrb[0].mxu0 %v428
        %v631 = vpop.f32.mrb[0].mxu0
        %v632 = vadd.f32 0.0, %v631
        %v633 = vpop.f32.mrb[0].mxu0
        %v634 = vadd.f32 0.0, %v633
        %635 = vmatprep.mubr.f32.mxu0 0.0
        %636 = vmatmul.mubr.f32.gmra.mrb[0].mxu0 %v431
        %v637 = vpop.f32.mrb[0].mxu0
        %v638 = vadd.f32 0.0, %v637
        %v639 = vpop.f32.mrb[0].mxu0
        %v640 = vadd.f32 0.0, %v639
        %641 = vmatprep.mubr.f32.mxu0 0.0
        %642 = vmatmul.mubr.f32.gmra.mrb[0].mxu0 %v434
        %v643 = vpop.f32.mrb[0].mxu0
        %v644 = vadd.f32 0.0, %v643
        %v645 = vpop.f32.mrb[0].mxu0
        %v646 = vadd.f32 0.0, %v645
        %647 = vmatprep.mubr.f32.mxu0 0.0
        %648 = vmatmul.mubr.f32.gmra.mrb[0].mxu0 %v437
        %v649 = vpop.f32.mrb[0].mxu0
        %v650 = vadd.f32 0.0, %v649
        %v651 = vpop.f32.mrb[0].mxu0
        %v652 = vadd.f32 0.0, %v651
        %653 = vmatprep.mubr.f32.mxu0 0.0
        %654 = vmatmul.mubr.f32.gmra.mrb[0].mxu0 %v440
        %v655 = vpop.f32.mrb[0].mxu0
        %v656 = vadd.f32 0.0, %v655
        %v657 = vpop.f32.mrb[0].mxu0
        %v658 = vadd.f32 0.0, %v657
        %659 = vmatprep.mubr.f32.mxu0 0.0
        %660 = vmatmul.mubr.f32.gmra.mrb[0].mxu0 %v443
        %v661 = vpop.f32.mrb[0].mxu0
        %v662 = vadd.f32 0.0, %v661
        %v663 = vpop.f32.mrb[0].mxu0
        %v664 = vadd.f32 0.0, %v663
        %665 = vmatprep.mubr.f32.mxu0 0.0
        %666 = vmatmul.mubr.f32.gmra.mrb[0].mxu0 %v446
        %v667 = vpop.f32.mrb[0].mxu0
        %v668 = vadd.f32 0.0, %v667
        %v669 = vpop.f32.mrb[0].mxu0
        %v670 = vadd.f32 0.0, %v669
        %671 = vmatprep.mubr.f32.mxu0 0.0
        %672 = vmatmul.mubr.f32.gmra.mrb[0].mxu0 %v449
        %v673 = vpop.f32.mrb[0].mxu0
        %v674 = vadd.f32 0.0, %v673
        %v675 = vpop.f32.mrb[0].mxu0
        %v676 = vadd.f32 0.0, %v675
        %677 = vmatprep.mubr.f32.mxu0 0.0
        %678 = vmatmul.mubr.f32.gmra.mrb[0].mxu0 %v452
        %v679 = vpop.f32.mrb[0].mxu0
        %v680 = vadd.f32 0.0, %v679
        %v681 = vpop.f32.mrb[0].mxu0
        %v682 = vadd.f32 0.0, %v681
        %683 = vmatprep.mubr.f32.mxu0 0.0
        %684 = vmatmul.mubr.f32.gmra.mrb[0].mxu0 %v455
        %v685 = vpop.f32.mrb[0].mxu0
        %v686 = vadd.f32 0.0, %v685
        %v687 = vpop.f32.mrb[0].mxu0
        %v688 = vadd.f32 0.0, %v687
        %689 = vmatprep.mubr.f32.mxu0 0.0
        %690 = vmatmul.mubr.f32.gmra.mrb[0].mxu0 %v458
        %v691 = vpop.f32.mrb[0].mxu0
        %v692 = vadd.f32 0.0, %v691
        %v693 = vpop.f32.mrb[0].mxu0
        %v694 = vadd.f32 0.0, %v693
        %695 = vmatprep.mubr.f32.mxu0 0.0
        %696 = vmatmul.mubr.f32.gmra.mrb[0].mxu0 %v461
        %v697 = vpop.f32.mrb[0].mxu0
        %v698 = vadd.f32 0.0, %v697
        %v699 = vpop.f32.mrb[0].mxu0
        %v700 = vadd.f32 0.0, %v699
        %701 = vmatprep.mubr.f32.mxu0 0.0
        %702 = vmatmul.mubr.f32.gmra.mrb[0].mxu0 %v464
        %v703 = vpop.f32.mrb[0].mxu0
        %v704 = vadd.f32 0.0, %v703
        %v705 = vpop.f32.mrb[0].mxu0
        %v706 = vadd.f32 0.0, %v705
        %707 = vmatprep.mubr.f32.mxu0 0.0
        %708 = vmatmul.mubr.f32.gmra.mrb[0].mxu0 %v467
        %v709 = vpop.f32.mrb[0].mxu0
        %v710 = vadd.f32 0.0, %v709
        %v711 = vpop.f32.mrb[0].mxu0
        %v712 = vadd.f32 0.0, %v711
        %713 = vmatprep.mubr.f32.mxu0 0.0
        %714 = vmatmul.mubr.f32.gmra.mrb[0].mxu0 %v470
        %v715 = vpop.f32.mrb[0].mxu0
        %v716 = vadd.f32 0.0, %v715
        %v717 = vpop.f32.mrb[0].mxu0
        %v718 = vadd.f32 0.0, %v717
        %719 = vmatprep.mubr.f32.mxu0 0.0
        %720 = vmatmul.mubr.f32.gmra.mrb[0].mxu0 %v473
        %v721 = vpop.f32.mrb[0].mxu0
        %v722 = vadd.f32 0.0, %v721
        %v723 = vpop.f32.mrb[0].mxu0
        %v724 = vadd.f32 0.0, %v723
        %725 = vmatprep.mubr.f32.mxu0 0.0
        %726 = vmatmul.mubr.f32.gmra.mrb[0].mxu0 %v476
        %v727 = vpop.f32.mrb[0].mxu0
        %v728 = vadd.f32 0.0, %v727
        %v729 = vpop.f32.mrb[0].mxu0
        %v730 = vadd.f32 0.0, %v729
        %731 = vmatprep.mubr.f32.mxu0 0.0
        %732 = vmatmul.mubr.f32.gmra.mrb[0].mxu0 %v479
        %v733 = vpop.f32.mrb[0].mxu0
        %v734 = vadd.f32 0.0, %v733
        %v735 = vpop.f32.mrb[0].mxu0
        %v736 = vadd.f32 0.0, %v735
        %737 = vdwg.mxu0
        %v738 = vmax.f32 %v548, %v560
        %v739 = vmax.f32 %v554, %v566
        %v740 = vmax.f32 %v738, %v572
        %v741 = vmax.f32 %v739, %v578
        %v742 = vmax.f32 %v740, %v584
        %v743 = vmax.f32 %v741, %v590
        %v744 = vmax.f32 %v742, %v596
        %v745 = vmax.f32 %v743, %v602
        %v746 = vmax.f32 %v744, %v608
        %v747 = vmax.f32 %v745, %v614
        %v748 = vmax.f32 %v746, %v620
        %v749 = vmax.f32 %v747, %v626
        %v750 = vmax.f32 %v748, %v632
        %v751 = vmax.f32 %v749, %v638
        %v752 = vmax.f32 %v750, %v644
        %v753 = vmax.f32 %v751, %v650
        %v754 = vmax.f32 %v752, %v656
        %v755 = vmax.f32 %v753, %v662
        %v756 = vmax.f32 %v754, %v668
        %v757 = vmax.f32 %v755, %v674
        %v758 = vmax.f32 %v756, %v680
        %v759 = vmax.f32 %v757, %v686
        %v760 = vmax.f32 %v758, %v692
        %v761 = vmax.f32 %v759, %v698
        %v762 = vmax.f32 %v760, %v704
        %v763 = vmax.f32 %v761, %v710
        %v764 = vmax.f32 %v762, %v716
        %v765 = vmax.f32 %v763, %v722
        %v766 = vmax.f32 %v764, %v728
        %v767 = vmax.f32 %v765, %v734
        %v768 = vmax.f32 %v766, %v767
        %v769 = vrot.slane %v768, 4
        %v770 = vmax.f32 %v768, %v769
        %v771 = vrot.slane %v770, 2
        %v772 = vmax.f32 %v770, %v771
        %v773 = vrot.slane %v772, 1
        %v774 = vmax.f32 %v772, %v773
        %v775 = vmax.f32 %v550, %v562
        %v776 = vmax.f32 %v556, %v568
        %v777 = vmax.f32 %v775, %v574
        %v778 = vmax.f32 %v776, %v580
        %v779 = vmax.f32 %v777, %v586
        %v780 = vmax.f32 %v778, %v592
        %v781 = vmax.f32 %v779, %v598
        %v782 = vmax.f32 %v780, %v604
        %v783 = vmax.f32 %v781, %v610
        %v784 = vmax.f32 %v782, %v616
        %v785 = vmax.f32 %v783, %v622
        %v786 = vmax.f32 %v784, %v628
        %v787 = vmax.f32 %v785, %v634
        %v788 = vmax.f32 %v786, %v640
        %v789 = vmax.f32 %v787, %v646
        %v790 = vmax.f32 %v788, %v652
        %v791 = vmax.f32 %v789, %v658
        %v792 = vmax.f32 %v790, %v664
        %v793 = vmax.f32 %v791, %v670
        %v794 = vmax.f32 %v792, %v676
        %v795 = vmax.f32 %v793, %v682
        %v796 = vmax.f32 %v794, %v688
        %v797 = vmax.f32 %v795, %v694
        %v798 = vmax.f32 %v796, %v700
        %v799 = vmax.f32 %v797, %v706
        %v800 = vmax.f32 %v798, %v712
        %v801 = vmax.f32 %v799, %v718
        %v802 = vmax.f32 %v800, %v724
        %v803 = vmax.f32 %v801, %v730
        %v804 = vmax.f32 %v802, %v736
        %v805 = vmax.f32 %v803, %v804
        %v806 = vrot.slane %v805, 4
        %v807 = vmax.f32 %v805, %v806
        %v808 = vrot.slane %v807, 2
        %v809 = vmax.f32 %v807, %v808
        %v810 = vrot.slane %v809, 1
        %v811 = vmax.f32 %v809, %v810
        %v812 = vsub.f32 %v548, %v774
        %v813 = vsub.f32 %v550, %v811
        %v814 = vsub.f32 %v554, %v774
        %v815 = vsub.f32 %v556, %v811
        %v816 = vsub.f32 %v560, %v774
        %v817 = vsub.f32 %v562, %v811
        %v818 = vsub.f32 %v566, %v774
        %v819 = vsub.f32 %v568, %v811
        %v820 = vsub.f32 %v572, %v774
        %v821 = vsub.f32 %v574, %v811
        %v822 = vsub.f32 %v578, %v774
        %v823 = vsub.f32 %v580, %v811
        %v824 = vsub.f32 %v584, %v774
        %v825 = vsub.f32 %v586, %v811
        %v826 = vsub.f32 %v590, %v774
        %v827 = vsub.f32 %v592, %v811
        %v828 = vsub.f32 %v596, %v774
        %v829 = vsub.f32 %v598, %v811
        %v830 = vsub.f32 %v602, %v774
        %v831 = vsub.f32 %v604, %v811
        %v832 = vsub.f32 %v608, %v774
        %v833 = vsub.f32 %v610, %v811
        %v834 = vsub.f32 %v614, %v774
        %v835 = vsub.f32 %v616, %v811
        %v836 = vsub.f32 %v620, %v774
        %v837 = vsub.f32 %v622, %v811
        %v838 = vsub.f32 %v626, %v774
        %v839 = vsub.f32 %v628, %v811
        %v840 = vsub.f32 %v632, %v774
        %v841 = vsub.f32 %v634, %v811
        %v842 = vsub.f32 %v638, %v774
        %v843 = vsub.f32 %v640, %v811
        %v844 = vsub.f32 %v644, %v774
        %v845 = vsub.f32 %v646, %v811
        %v846 = vsub.f32 %v650, %v774
        %v847 = vsub.f32 %v652, %v811
        %v848 = vsub.f32 %v656, %v774
        %v849 = vsub.f32 %v658, %v811
        %v850 = vsub.f32 %v662, %v774
        %v851 = vsub.f32 %v664, %v811
        %v852 = vsub.f32 %v668, %v774
        %v853 = vsub.f32 %v670, %v811
        %v854 = vsub.f32 %v674, %v774
        %v855 = vsub.f32 %v676, %v811
        %v856 = vsub.f32 %v680, %v774
        %v857 = vsub.f32 %v682, %v811
        %v858 = vsub.f32 %v686, %v774
        %v859 = vsub.f32 %v688, %v811
        %v860 = vsub.f32 %v692, %v774
        %v861 = vsub.f32 %v694, %v811
        %v862 = vsub.f32 %v698, %v774
        %v863 = vsub.f32 %v700, %v811
        %v864 = vsub.f32 %v704, %v774
        %v865 = vsub.f32 %v706, %v811
        %v866 = vsub.f32 %v710, %v774
        %v867 = vsub.f32 %v712, %v811
        %v868 = vsub.f32 %v716, %v774
        %v869 = vsub.f32 %v718, %v811
        %v870 = vsub.f32 %v722, %v774
        %v871 = vsub.f32 %v724, %v811
        %v872 = vsub.f32 %v728, %v774
        %v873 = vsub.f32 %v730, %v811
        %v874 = vsub.f32 %v734, %v774
        %v875 = vsub.f32 %v736, %v811
        %v876 = vmul.f32 %v812, 1.442695
        %v877 = vpow.pop %v876
        %v878 = vmul.f32 %v813, 1.442695
        %v879 = vpow.pop %v878
        %v880 = vmul.f32 %v814, 1.442695
        %v881 = vpow.pop %v880
        %v882 = vmul.f32 %v815, 1.442695
        %v883 = vpow.pop %v882
        %v884 = vmul.f32 %v816, 1.442695
        %v885 = vpow.pop %v884
        %v886 = vmul.f32 %v817, 1.442695
        %v887 = vpow.pop %v886
        %v888 = vmul.f32 %v818, 1.442695
        %v889 = vpow.pop %v888
        %v890 = vmul.f32 %v819, 1.442695
        %v891 = vpow.pop %v890
        %v892 = vmul.f32 %v820, 1.442695
        %v893 = vpow.pop %v892
        %v894 = vmul.f32 %v821, 1.442695
        %v895 = vpow.pop %v894
        %v896 = vmul.f32 %v822, 1.442695
        %v897 = vpow.pop %v896
        %v898 = vmul.f32 %v823, 1.442695
        %v899 = vpow.pop %v898
        %v900 = vmul.f32 %v824, 1.442695
        %v901 = vpow.pop %v900
        %v902 = vmul.f32 %v825, 1.442695
        %v903 = vpow.pop %v902
        %v904 = vmul.f32 %v826, 1.442695
        %v905 = vpow.pop %v904
        %v906 = vmul.f32 %v827, 1.442695
        %v907 = vpow.pop %v906
        %v908 = vmul.f32 %v828, 1.442695
        %v909 = vpow.pop %v908
        %v910 = vmul.f32 %v829, 1.442695
        %v911 = vpow.pop %v910
        %v912 = vmul.f32 %v830, 1.442695
        %v913 = vpow.pop %v912
        %v914 = vmul.f32 %v831, 1.442695
        %v915 = vpow.pop %v914
        %v916 = vmul.f32 %v832, 1.442695
        %v917 = vpow.pop %v916
        %v918 = vmul.f32 %v833, 1.442695
        %v919 = vpow.pop %v918
        %v920 = vmul.f32 %v834, 1.442695
        %v921 = vpow.pop %v920
        %v922 = vmul.f32 %v835, 1.442695
        %v923 = vpow.pop %v922
        %v924 = vmul.f32 %v836, 1.442695
        %v925 = vpow.pop %v924
        %v926 = vmul.f32 %v837, 1.442695
        %v927 = vpow.pop %v926
        %v928 = vmul.f32 %v838, 1.442695
        %v929 = vpow.pop %v928
        %v930 = vmul.f32 %v839, 1.442695
        %v931 = vpow.pop %v930
        %v932 = vmul.f32 %v840, 1.442695
        %v933 = vpow.pop %v932
        %v934 = vmul.f32 %v841, 1.442695
        %v935 = vpow.pop %v934
        %v936 = vmul.f32 %v842, 1.442695
        %v937 = vpow.pop %v936
        %v938 = vmul.f32 %v843, 1.442695
        %v939 = vpow.pop %v938
        %v940 = vmul.f32 %v844, 1.442695
        %v941 = vpow.pop %v940
        %v942 = vmul.f32 %v845, 1.442695
        %v943 = vpow.pop %v942
        %v944 = vmul.f32 %v846, 1.442695
        %v945 = vpow.pop %v944
        %v946 = vmul.f32 %v847, 1.442695
        %v947 = vpow.pop %v946
        %v948 = vmul.f32 %v848, 1.442695
        %v949 = vpow.pop %v948
        %v950 = vmul.f32 %v849, 1.442695
        %v951 = vpow.pop %v950
        %v952 = vmul.f32 %v850, 1.442695
        %v953 = vpow.pop %v952
        %v954 = vmul.f32 %v851, 1.442695
        %v955 = vpow.pop %v954
        %v956 = vmul.f32 %v852, 1.442695
        %v957 = vpow.pop %v956
        %v958 = vmul.f32 %v853, 1.442695
        %v959 = vpow.pop %v958
        %v960 = vmul.f32 %v854, 1.442695
        %v961 = vpow.pop %v960
        %v962 = vmul.f32 %v855, 1.442695
        %v963 = vpow.pop %v962
        %v964 = vmul.f32 %v856, 1.442695
        %v965 = vpow.pop %v964
        %v966 = vmul.f32 %v857, 1.442695
        %v967 = vpow.pop %v966
        %v968 = vmul.f32 %v858, 1.442695
        %v969 = vpow.pop %v968
        %v970 = vmul.f32 %v859, 1.442695
        %v971 = vpow.pop %v970
        %v972 = vmul.f32 %v860, 1.442695
        %v973 = vpow.pop %v972
        %v974 = vmul.f32 %v861, 1.442695
        %v975 = vpow.pop %v974
        %v976 = vmul.f32 %v862, 1.442695
        %v977 = vpow.pop %v976
        %v978 = vmul.f32 %v863, 1.442695
        %v979 = vpow.pop %v978
        %v980 = vmul.f32 %v864, 1.442695
        %v981 = vpow.pop %v980
        %v982 = vmul.f32 %v865, 1.442695
        %v983 = vpow.pop %v982
        %v984 = vmul.f32 %v866, 1.442695
        %v985 = vpow.pop %v984
        %v986 = vmul.f32 %v867, 1.442695
        %v987 = vpow.pop %v986
        %v988 = vmul.f32 %v868, 1.442695
        %v989 = vpow.pop %v988
        %v990 = vmul.f32 %v869, 1.442695
        %v991 = vpow.pop %v990
        %v992 = vmul.f32 %v870, 1.442695
        %v993 = vpow.pop %v992
        %v994 = vmul.f32 %v871, 1.442695
        %v995 = vpow.pop %v994
        %v996 = vmul.f32 %v872, 1.442695
        %v997 = vpow.pop %v996
        %v998 = vmul.f32 %v873, 1.442695
        %v999 = vpow.pop %v998
        %v1000 = vmul.f32 %v874, 1.442695
        %v1001 = vpow.pop %v1000
        %v1002 = vmul.f32 %v875, 1.442695
        %v1003 = vpow.pop %v1002
        %v1004 = vadd.f32 %v877, %v881
        %v1005 = vadd.f32 %v1004, %v885
        %v1006 = vadd.f32 %v1005, %v889
        %v1007 = vadd.f32 %v1006, %v893
        %v1008 = vadd.f32 %v1007, %v897
        %v1009 = vadd.f32 %v1008, %v901
        %v1010 = vadd.f32 %v1009, %v905
        %v1011 = vadd.f32 %v1010, %v909
        %v1012 = vadd.f32 %v1011, %v913
        %v1013 = vadd.f32 %v1012, %v917
        %v1014 = vadd.f32 %v1013, %v921
        %v1015 = vadd.f32 %v1014, %v925
        %v1016 = vadd.f32 %v1015, %v929
        %v1017 = vadd.f32 %v1016, %v933
        %v1018 = vadd.f32 %v1017, %v937
        %v1019 = vadd.f32 %v1018, %v941
        %v1020 = vadd.f32 %v1019, %v945
        %v1021 = vadd.f32 %v1020, %v949
        %v1022 = vadd.f32 %v1021, %v953
        %v1023 = vadd.f32 %v1022, %v957
        %v1024 = vadd.f32 %v1023, %v961
        %v1025 = vadd.f32 %v1024, %v965
        %v1026 = vadd.f32 %v1025, %v969
        %v1027 = vadd.f32 %v1026, %v973
        %v1028 = vadd.f32 %v1027, %v977
        %v1029 = vadd.f32 %v1028, %v981
        %v1030 = vadd.f32 %v1029, %v985
        %v1031 = vadd.f32 %v1030, %v989
        %v1032 = vadd.f32 %v1031, %v993
        %v1033 = vadd.f32 %v1032, %v997
        %v1034 = vadd.f32 %v1033, %v1001
        %v1035 = vrot.slane %v1034, 4
        %v1036 = vadd.f32 %v1034, %v1035
        %v1037 = vrot.slane %v1036, 2
        %v1038 = vadd.f32 %v1036, %v1037
        %v1039 = vrot.slane %v1038, 1
        %v1040 = vadd.f32 %v1038, %v1039
        %v1041 = vadd.f32 %v879, %v883
        %v1042 = vadd.f32 %v1041, %v887
        %v1043 = vadd.f32 %v1042, %v891
        %v1044 = vadd.f32 %v1043, %v895
        %v1045 = vadd.f32 %v1044, %v899
        %v1046 = vadd.f32 %v1045, %v903
        %v1047 = vadd.f32 %v1046, %v907
        %v1048 = vadd.f32 %v1047, %v911
        %v1049 = vadd.f32 %v1048, %v915
        %v1050 = vadd.f32 %v1049, %v919
        %v1051 = vadd.f32 %v1050, %v923
        %v1052 = vadd.f32 %v1051, %v927
        %v1053 = vadd.f32 %v1052, %v931
        %v1054 = vadd.f32 %v1053, %v935
        %v1055 = vadd.f32 %v1054, %v939
        %v1056 = vadd.f32 %v1055, %v943
        %v1057 = vadd.f32 %v1056, %v947
        %v1058 = vadd.f32 %v1057, %v951
        %v1059 = vadd.f32 %v1058, %v955
        %v1060 = vadd.f32 %v1059, %v959
        %v1061 = vadd.f32 %v1060, %v963
        %v1062 = vadd.f32 %v1061, %v967
        %v1063 = vadd.f32 %v1062, %v971
        %v1064 = vadd.f32 %v1063, %v975
        %v1065 = vadd.f32 %v1064, %v979
        %v1066 = vadd.f32 %v1065, %v983
        %v1067 = vadd.f32 %v1066, %v987
        %v1068 = vadd.f32 %v1067, %v991
        %v1069 = vadd.f32 %v1068, %v995
        %v1070 = vadd.f32 %v1069, %v999
        %v1071 = vadd.f32 %v1070, %v1003
        %v1072 = vrot.slane %v1071, 4
        %v1073 = vadd.f32 %v1071, %v1072
        %v1074 = vrot.slane %v1073, 2
        %v1075 = vadd.f32 %v1073, %v1074
        %v1076 = vrot.slane %v1075, 1
        %v1077 = vadd.f32 %v1075, %v1076
        %v1078 = vrcp.pop %v1040
        %v1079 = vrcp.pop %v1077
        %v1080 = vmul.f32 %v877, %v1078
        %v1081 = vmul.f32 %v879, %v1079
        %v1082 = vmul.f32 %v881, %v1078
        %v1083 = vmul.f32 %v883, %v1079
        %v1084 = vmul.f32 %v885, %v1078
        %v1085 = vmul.f32 %v887, %v1079
        %v1086 = vmul.f32 %v889, %v1078
        %v1087 = vmul.f32 %v891, %v1079
        %v1088 = vmul.f32 %v893, %v1078
        %v1089 = vmul.f32 %v895, %v1079
        %v1090 = vmul.f32 %v897, %v1078
        %v1091 = vmul.f32 %v899, %v1079
        %v1092 = vmul.f32 %v901, %v1078
        %v1093 = vmul.f32 %v903, %v1079
        %v1094 = vmul.f32 %v905, %v1078
        %v1095 = vmul.f32 %v907, %v1079
        %v1096 = vmul.f32 %v909, %v1078
        %v1097 = vmul.f32 %v911, %v1079
        %v1098 = vmul.f32 %v913, %v1078
        %v1099 = vmul.f32 %v915, %v1079
        %v1100 = vmul.f32 %v917, %v1078
        %v1101 = vmul.f32 %v919, %v1079
        %v1102 = vmul.f32 %v921, %v1078
        %v1103 = vmul.f32 %v923, %v1079
        %v1104 = vmul.f32 %v925, %v1078
        %v1105 = vmul.f32 %v927, %v1079
        %v1106 = vmul.f32 %v929, %v1078
        %v1107 = vmul.f32 %v931, %v1079
        %v1108 = vmul.f32 %v933, %v1078
        %v1109 = vmul.f32 %v935, %v1079
        %v1110 = vmul.f32 %v937, %v1078
        %v1111 = vmul.f32 %v939, %v1079
        %v1112 = vmul.f32 %v941, %v1078
        %v1113 = vmul.f32 %v943, %v1079
        %v1114 = vmul.f32 %v945, %v1078
        %v1115 = vmul.f32 %v947, %v1079
        %v1116 = vmul.f32 %v949, %v1078
        %v1117 = vmul.f32 %v951, %v1079
        %v1118 = vmul.f32 %v953, %v1078
        %v1119 = vmul.f32 %v955, %v1079
        %v1120 = vmul.f32 %v957, %v1078
        %v1121 = vmul.f32 %v959, %v1079
        %v1122 = vmul.f32 %v961, %v1078
        %v1123 = vmul.f32 %v963, %v1079
        %v1124 = vmul.f32 %v965, %v1078
        %v1125 = vmul.f32 %v967, %v1079
        %v1126 = vmul.f32 %v969, %v1078
        %v1127 = vmul.f32 %v971, %v1079
        %v1128 = vmul.f32 %v973, %v1078
        %v1129 = vmul.f32 %v975, %v1079
        %v1130 = vmul.f32 %v977, %v1078
        %v1131 = vmul.f32 %v979, %v1079
        %v1132 = vmul.f32 %v981, %v1078
        %v1133 = vmul.f32 %v983, %v1079
        %v1134 = vmul.f32 %v985, %v1078
        %v1135 = vmul.f32 %v987, %v1079
        %v1136 = vmul.f32 %v989, %v1078
        %v1137 = vmul.f32 %v991, %v1079
        %v1138 = vmul.f32 %v993, %v1078
        %v1139 = vmul.f32 %v995, %v1079
        %v1140 = vmul.f32 %v997, %v1078
        %v1141 = vmul.f32 %v999, %v1079
        %v1142 = vmul.f32 %v1001, %v1078
        %v1143 = vmul.f32 %v1003, %v1079
        %1144 = vmatprep.subr.mxu0 %v1081
        %1145 = vmatpush1.msra.mxu0 %v1080
        %1146 = vmatprep.subr.mxu0 %v1083
        %1147 = vmatpush1.msra.mxu0 %v1082
        %1148 = vmatprep.subr.mxu0 %v1085
        %1149 = vmatpush1.msra.mxu0 %v1084
        %1150 = vmatprep.subr.mxu0 %v1087
        %1151 = vmatpush1.msra.mxu0 %v1086
        %1152 = vmatprep.subr.mxu0 %v1089
        %1153 = vmatpush1.msra.mxu0 %v1088
        %1154 = vmatprep.subr.mxu0 %v1091
        %1155 = vmatpush1.msra.mxu0 %v1090
        %1156 = vmatprep.subr.mxu0 %v1093
        %1157 = vmatpush1.msra.mxu0 %v1092
        %1158 = vmatprep.subr.mxu0 %v1095
        %1159 = vmatpush1.msra.mxu0 %v1094
        %1160 = vmatprep.subr.mxu0 %v1097
        %1161 = vmatpush1.msra.mxu0 %v1096
        %1162 = vmatprep.subr.mxu0 %v1099
        %1163 = vmatpush1.msra.mxu0 %v1098
        %1164 = vmatprep.subr.mxu0 %v1101
        %1165 = vmatpush1.msra.mxu0 %v1100
        %1166 = vmatprep.subr.mxu0 %v1103
        %1167 = vmatpush1.msra.mxu0 %v1102
        %1168 = vmatprep.subr.mxu0 %v1105
        %1169 = vmatpush1.msra.mxu0 %v1104
        %1170 = vmatprep.subr.mxu0 %v1107
        %1171 = vmatpush1.msra.mxu0 %v1106
        %1172 = vmatprep.subr.mxu0 %v1109
        %1173 = vmatpush1.msra.mxu0 %v1108
        %1174 = vmatprep.subr.mxu0 %v1111
        %1175 = vmatpush1.msra.mxu0 %v1110
        %1176 = vmatprep.subr.mxu0 %v1113
        %1177 = vmatpush1.msra.mxu0 %v1112
        %1178 = vmatprep.subr.mxu0 %v1115
        %1179 = vmatpush1.msra.mxu0 %v1114
        %1180 = vmatprep.subr.mxu0 %v1117
        %1181 = vmatpush1.msra.mxu0 %v1116
        %1182 = vmatprep.subr.mxu0 %v1119
        %1183 = vmatpush1.msra.mxu0 %v1118
        %1184 = vmatprep.subr.mxu0 %v1121
        %1185 = vmatpush1.msra.mxu0 %v1120
        %1186 = vmatprep.subr.mxu0 %v1123
        %1187 = vmatpush1.msra.mxu0 %v1122
        %1188 = vmatprep.subr.mxu0 %v1125
        %1189 = vmatpush1.msra.mxu0 %v1124
        %1190 = vmatprep.subr.mxu0 %v1127
        %1191 = vmatpush1.msra.mxu0 %v1126
        %1192 = vmatprep.subr.mxu0 %v1129
        %1193 = vmatpush1.msra.mxu0 %v1128
        %1194 = vmatprep.subr.mxu0 %v1131
        %1195 = vmatpush1.msra.mxu0 %v1130
        %1196 = vmatprep.subr.mxu0 %v1133
        %1197 = vmatpush1.msra.mxu0 %v1132
        %1198 = vmatprep.subr.mxu0 %v1135
        %1199 = vmatpush1.msra.mxu0 %v1134
        %1200 = vmatprep.subr.mxu0 %v1137
        %1201 = vmatpush1.msra.mxu0 %v1136
        %1202 = vmatprep.subr.mxu0 %v1139
        %1203 = vmatpush1.msra.mxu0 %v1138
        %1204 = vmatprep.subr.mxu0 %v1141
        %1205 = vmatpush1.msra.mxu0 %v1140
        %1206 = vmatprep.subr.mxu0 %v1143
        %1207 = vmatpush1.msra.mxu0 %v1142
        %1208 = vmatprep.mubr.f32.mxu0 %v318
        %1209 = vmatmul.mubr.f32.gmra.mrb[0].mxu0 %v316
        %v1210 = vpop.f32.mrb[0].mxu0
        %v1211 = vadd.f32 0.0, %v1210
        %v1212 = vpop.f32.mrb[0].mxu0
        %v1213 = vadd.f32 0.0, %v1212
        %1214 = vdwg.mxu0
        %v1215 = vstv %s203
        %v1216 = vmul.f32 %v1215, %v1211
        %v1217 = vmul.f32 %v1215, %v1213
        %v1219 = vadd.f32 %v1216, %v204
        %v1220 = vadd.f32 %v1217, %v221
        %v1223 = vcombine.low %v1219, %v1220
        %1225 = vst [vmem:[%s191] sm:$0xff] %v1223
        %s1226 = sand.u32 %s116, 1
        %s1227 = scalar_lea.sflag [#allocation4], %s1226
        %s1228 = sand.u32 %s116, 1
        %s1229 = smul.addr %s1228, 8
        %s1230 = scalar_lea.vmem [#allocation3], %s1229
        // Predicated region
        $region37: #{tpu_custom_call.1} parent=35 // pred_check
          %p1231 = pneg %p126
        $region38: #{tpu_custom_call.1} parent=35 // pred_check_branch
          %1233 = sbr.rel (%p1231) target = $region40
        $region39: #{tpu_custom_call.1} parent=35 // pred_region
          %s1235 = ssub.s32 128, 128
          %1236 = vsyncadd %s1227, %s1235
          %s1237 = smul.addr %s19, 2
          %s1238 = smul.addr %s1237, 64
          %s1239 = scalar_lea.hbm %s4, %s1238
          %s1241 = sshll.u32 %s1230, 4
          %s1242 = int_to_ptr.vmem [resolvable:$true] %s1241
          %1244 = dma.vmem_to_hbm [thread:$0]  %s1242, 128, %s1239, %s1227
        $region40: #{tpu_custom_call.1} parent=35 // pred_fallthru
          _
      $region36: #{tpu_custom_call.1} parent=5 // pred_fallthru
        _
      %p1245 = scmp.le.s32.totalorder 2, %s14
      // Predicated region
      $region41: #{tpu_custom_call.1} parent=5 // pred_check
        %p1246 = pneg %p1245
      $region42: #{tpu_custom_call.1} parent=5 // pred_check_branch
        %1248 = sbr.rel (%p1246) target = $region44
      $region43: #{tpu_custom_call.1} parent=5 // pred_region
        %s1249 = ssub.s32 %s14, 2
        // Predicated region
        $region45: #{tpu_custom_call.1} parent=43 // pred_check
          %p1250 = pneg %p132
        $region46: #{tpu_custom_call.1} parent=43 // pred_check_branch
          %1252 = sbr.rel (%p1250) target = $region48
        $region47: #{tpu_custom_call.1} parent=43 // pred_region
          %s1253 = sand.u32 %s117, 1
          %s1254 = scalar_lea.sflag [#allocation4], %s1253
          %s1255 = sand.u32 %s117, 1
          %s1256 = smul.addr %s1255, 8
          %s1257 = scalar_lea.vmem [#allocation3], %s1256
          %1258 = dma.done %s1254, 128
        $region48: #{tpu_custom_call.1} parent=43 // pred_fallthru
          _
      $region44: #{tpu_custom_call.1} parent=5 // pred_fallthru
        _
    $region6: #{tpu_custom_call.1} parent=1 // loop_footer
      %s18 = sadd.s32 1, %s14
    $region7: #{tpu_custom_call.1} parent=1 // loop_footer_branch
      %13 = sbr.rel target = $region3
    $region8: #{tpu_custom_call.1} parent=1 // loop_exit
      _
    %1259 = vsyncpa [#allocation4], 1
    %s1260 = scalar_lea.sflag [#allocation4], 1
    %1261 = vsyncpa %s1260, 1

</llo_original>
